<compile_context>
chip_gen: v7x
topology: tpu7x:2x2x1
jax: 0.10.0
libtpu: 0.0.40
codegen_flags: <defaults>
</compile_context>

<pallas_src>
import jax
import jax.numpy as jnp
from jax.experimental import pallas as pl
from jax.experimental.pallas import tpu as pltpu

LANES = 128
_VMEM_TILE_BUDGET_BYTES = 24 * 1024 * 1024  # per-step working set budget (safe on v5e/v6e/v7x)


def _round_up(v, m):
    return ((v + m - 1) // m) * m


def downconv_kernel(x_ref, w_ref, ba_ref, o_ref):
    # x_ref : (1, tm, K)    patch rows (bf16 or f32)
    # w_ref : (K, CP)       conv weights as GEMM matrix, Cout padded to CP lanes (resident)
    # ba_ref: (2, CP)       f32; row 0 = conv bias, row 1 = PReLU slope (resident)
    # o_ref : (1, Cout, tm) output tile, channel-major (lane-dense along tm)
    y = jnp.dot(x_ref[0], w_ref[...], preferred_element_type=jnp.float32)  # (tm, CP), f32 acc
    ba = ba_ref[...]
    bias = ba[0:1, :]
    alpha = ba[1:2, :]
    y = y + bias
    y = jnp.where(y > 0.0, y, alpha * y)          # PReLU epilogue in f32 (v5e: no bf16 VPU)
    y_t = y.T                                     # (CP, tm) via XLU, overlapped with MXU/DMA
    cout = o_ref.shape[1]
    o_ref[0] = y_t[:cout, :].astype(o_ref.dtype)  # lane-dense store, padding lanes dropped


def downconv_pallas(x, conv_w, conv_b, prelu_a, *, tm=1024, use_bf16=True):
    """x: (N, Cin, D, H, W). conv_w: (Cout, Cin, 2, 2, 2). Returns (N, Cout, D//2, H//2, W//2)."""
    N, C, D, H, W = x.shape
    Cout = conv_w.shape[0]
    Do, Ho, Wo = D // 2, H // 2, W // 2
    Mn = Do * Ho * Wo
    K = C * 8
    CP = _round_up(Cout, LANES)

    compute_dtype = jnp.bfloat16 if use_bf16 else x.dtype
    x_bytes = jnp.dtype(compute_dtype).itemsize

    # ---- tile size: as large as fits the VMEM budget; multiple of 128 keeps output lane-dense ----
    if Mn <= LANES:
        tm_eff = Mn
    else:
        tm_eff = max(LANES, (min(tm, Mn) // LANES) * LANES)

        def step_bytes(t):
            return (2 * t * K * x_bytes       # double-buffered X tile
                    + K * CP * x_bytes        # resident W
                    + 2 * CP * 4              # bias / slope
                    + 2 * Cout * t * 4        # double-buffered output tile
                    + 2 * t * CP * 4)         # f32 GEMM result + transpose temp

        while tm_eff > LANES and step_bytes(tm_eff) > _VMEM_TILE_BUDGET_BYTES:
            tm_eff -= LANES

    # ---- glue: patch gather, done in bf16 so the one remaining HBM transpose moves half the bytes
    xc = x.astype(compute_dtype)
    xp = xc.reshape(N, C, Do, 2, Ho, 2, Wo, 2)
    xp = jnp.transpose(xp, (0, 2, 4, 6, 1, 3, 5, 7))           # (N,Do,Ho,Wo,C,2,2,2)
    xmat = xp.reshape(N, Mn, K)
    # TODO(synk): fuse this gather into the kernel (NDHWC layout or in-kernel VMEM reorder).

    wmat = conv_w.reshape(Cout, K).T.astype(compute_dtype)      # (K, Cout), (c,kd,kh,kw) order
    w_pad = jnp.zeros((K, CP), compute_dtype).at[:, :Cout].set(wmat)
    ba = (jnp.zeros((2, CP), jnp.float32)
          .at[0, :Cout].set(conv_b.astype(jnp.float32))
          .at[1, :Cout].set(prelu_a.astype(jnp.float32)))

    grid = (N, pl.cdiv(Mn, tm_eff))

    out_bytes = N * Cout * Mn * jnp.dtype(x.dtype).itemsize
    cost = pl.CostEstimate(
        flops=2 * N * Mn * K * Cout,
        transcendentals=0,
        bytes_accessed=xmat.size * x_bytes + w_pad.size * x_bytes + ba.size * 4 + out_bytes,
    )

    out = pl.pallas_call(
        downconv_kernel,
        out_shape=jax.ShapeDtypeStruct((N, Cout, Mn), x.dtype),
        grid_spec=pltpu.PrefetchScalarGridSpec(
            num_scalar_prefetch=0,
            grid=grid,
            in_specs=[
                pl.BlockSpec((1, tm_eff, K), lambda n, m: (n, m, 0)),
                pl.BlockSpec((K, CP), lambda n, m: (0, 0)),      # resident weights
                pl.BlockSpec((2, CP), lambda n, m: (0, 0)),      # resident bias + slope
            ],
            out_specs=pl.BlockSpec((1, Cout, tm_eff), lambda n, m: (n, 0, m)),
        ),
        compiler_params=pltpu.CompilerParams(
            dimension_semantics=("parallel", "parallel"),
            vmem_limit_bytes=32 * 1024 * 1024,
        ),
        cost_estimate=cost,
    )(xmat, w_pad, ba)

    # Output is already channel-major -> NC'D'H'W' is a free reshape (no HBM transpose).
    return out.reshape(N, Cout, Do, Ho, Wo)


def downconv_reference(x, conv_w, conv_b, prelu_a):
    """Plain-JAX reference matching PyTorch Conv3d(k=2, s=2) + PReLU."""
    y = jax.lax.conv_general_dilated(
        x, conv_w,
        window_strides=(2, 2, 2),
        padding="VALID",
        dimension_numbers=("NCDHW", "OIDHW", "NCDHW"),
    )
    y = y + conv_b.reshape(1, -1, 1, 1, 1)
    a = prelu_a.reshape(1, -1, 1, 1, 1)
    return jnp.where(y > 0, y, a * y)


if __name__ == "__main__":
    key = jax.random.PRNGKey(0)
    k_x, k_w, k_b = jax.random.split(key, 3)

    N, Cin, Cout = 2, 4, 8
    D = H = W = 16
    x = jax.random.normal(k_x, (N, Cin, D, H, W), dtype=jnp.float32)

    # Shapes match nn.Conv3d(Cin, Cout, 2, 2) + nn.PReLU(Cout)
    conv_w = jax.random.normal(k_w, (Cout, Cin, 2, 2, 2), dtype=jnp.float32) * 0.1
    conv_b = jax.random.normal(k_b, (Cout,), dtype=jnp.float32) * 0.1
    prelu_a = jnp.full((Cout,), 0.25, dtype=jnp.float32)   # PyTorch PReLU default init

    fwd = jax.jit(downconv_pallas, static_argnames=("tm", "use_bf16"))

    out_bf16 = jax.block_until_ready(fwd(x, conv_w, conv_b, prelu_a, use_bf16=True))
    out_f32 = jax.block_until_ready(fwd(x, conv_w, conv_b, prelu_a, use_bf16=False))
    ref = jax.block_until_ready(downconv_reference(x, conv_w, conv_b, prelu_a))

    assert out_bf16.shape == (N, Cout, D // 2, H // 2, W // 2), out_bf16.shape
    err_f32 = float(jnp.max(jnp.abs(out_f32 - ref)))
    err_bf16 = float(jnp.max(jnp.abs(out_bf16 - ref)))
    assert err_f32 < 1e-4, ("f32 path mismatch", err_f32)
    assert err_bf16 < 5e-2, ("bf16 path mismatch", err_bf16)

    print("KERNEL_OK")
</pallas_src>

<mosaic_0001>
module attributes {stable_mosaic.version = 11 : i64} {
  func.func @downconv_kernel(%arg0: i32, %arg1: i32, %arg2: memref<1x512x32xbf16, #tpu.memory_space<vmem>>, %arg3: memref<32x128xbf16, #tpu.memory_space<vmem>>, %arg4: memref<2x128xf32, #tpu.memory_space<vmem>>, %arg5: memref<1x8x512xf32, #tpu.memory_space<vmem>>) attributes {dimension_semantics = [#tpu.dimension_semantics<parallel>, #tpu.dimension_semantics<parallel>], iteration_bounds = array<i64: 2, 1>, scalar_prefetch = 0 : i64, scratch_operands = 0 : i64, tpu.core_type = #tpu.core_type<tc>, window_params = [{transform_indices = @transform_0, window_bounds = array<i64: 1, 512, 32>}, {pipeline_mode = #tpu.pipeline_mode<synchronous>, transform_indices = @transform_1, window_bounds = array<i64: 32, 128>}, {pipeline_mode = #tpu.pipeline_mode<synchronous>, transform_indices = @transform_2, window_bounds = array<i64: 2, 128>}, {transform_indices = @transform_3, window_bounds = array<i64: 1, 8, 512>}]} {
    %c0 = arith.constant 0 : index
    %c0_0 = arith.constant 0 : index
    %c0_1 = arith.constant 0 : index
    %0 = vector.load %arg2[%c0, %c0_0, %c0_1] : memref<1x512x32xbf16, #tpu.memory_space<vmem>>, vector<1x512x32xbf16>
    %1 = vector.shape_cast %0 : vector<1x512x32xbf16> to vector<512x32xbf16>
    %c0_2 = arith.constant 0 : index
    %c0_3 = arith.constant 0 : index
    %2 = vector.load %arg3[%c0_2, %c0_3] : memref<32x128xbf16, #tpu.memory_space<vmem>>, vector<32x128xbf16>
    %cst = arith.constant dense<0.000000e+00> : vector<512x128xf32>
    %3 = tpu.matmul %1, %2, %cst {dimension_numbers = #tpu.dot_dimension_numbers<[1], [0], [0], [1], [0, 0, 1, 1], [], []>} : vector<512x32xbf16>, vector<32x128xbf16>, vector<512x128xf32> -> vector<512x128xf32>
    %c0_4 = arith.constant 0 : index
    %c0_5 = arith.constant 0 : index
    %4 = vector.load %arg4[%c0_4, %c0_5] : memref<2x128xf32, #tpu.memory_space<vmem>>, vector<2x128xf32>
    %5 = vector.extract_strided_slice %4 {offsets = [0, 0], sizes = [1, 128], strides = [1, 1]} : vector<2x128xf32> to vector<1x128xf32>
    %6 = vector.extract_strided_slice %4 {offsets = [1, 0], sizes = [1, 128], strides = [1, 1]} : vector<2x128xf32> to vector<1x128xf32>
    %7 = vector.broadcast %5 : vector<1x128xf32> to vector<512x128xf32>
    %8 = arith.addf %3, %7 : vector<512x128xf32>
    %cst_6 = arith.constant 0.000000e+00 : f32
    %9 = vector.broadcast %cst_6 : f32 to vector<512x128xf32>
    %10 = arith.cmpf ogt, %8, %9 : vector<512x128xf32>
    %11 = vector.broadcast %6 : vector<1x128xf32> to vector<512x128xf32>
    %12 = arith.mulf %11, %8 : vector<512x128xf32>
    %13 = arith.select %10, %8, %12 : vector<512x128xi1>, vector<512x128xf32>
    %14 = tpu.transpose %13, [1, 0] : vector<512x128xf32> -> vector<128x512xf32>
    %15 = vector.extract_strided_slice %14 {offsets = [0, 0], sizes = [8, 512], strides = [1, 1]} : vector<128x512xf32> to vector<8x512xf32>
    %c0_7 = arith.constant 0 : index
    %c0_8 = arith.constant 0 : index
    %c0_9 = arith.constant 0 : index
    %16 = vector.load %arg5[%c0_7, %c0_8, %c0_9] : memref<1x8x512xf32, #tpu.memory_space<vmem>>, vector<1x8x512xf32>
    %17 = vector.shape_cast %16 : vector<1x8x512xf32> to vector<8x512xf32>
    %18 = vector.shape_cast %15 : vector<8x512xf32> to vector<1x8x512xf32>
    tpu.vector_store %arg5[%c0_7, %c0_8, %c0_9], %18 {strides = array<i32>} : memref<1x8x512xf32, #tpu.memory_space<vmem>>, vector<1x8x512xf32>,
    return
  }
  func.func @transform_0(%arg0: i32, %arg1: i32) -> (i32, i32, i32) {
    %c0_i32 = arith.constant 0 : i32
    %c0_i32_0 = arith.constant 0 : i32
    return %arg0, %arg1, %c0_i32 : i32, i32, i32
  }
  func.func @transform_1(%arg0: i32, %arg1: i32) -> (i32, i32) {
    %c0_i32 = arith.constant 0 : i32
    %c0_i32_0 = arith.constant 0 : i32
    %c0_i32_1 = arith.constant 0 : i32
    return %c0_i32, %c0_i32_0 : i32, i32
  }
  func.func @transform_2(%arg0: i32, %arg1: i32) -> (i32, i32) {
    %c0_i32 = arith.constant 0 : i32
    %c0_i32_0 = arith.constant 0 : i32
    %c0_i32_1 = arith.constant 0 : i32
    return %c0_i32, %c0_i32_0 : i32, i32
  }
  func.func @transform_3(%arg0: i32, %arg1: i32) -> (i32, i32, i32) {
    %c0_i32 = arith.constant 0 : i32
    %c0_i32_0 = arith.constant 0 : i32
    return %arg0, %c0_i32, %arg1 : i32, i32, i32
  }
}

</mosaic_0001>

<llo_original>
// kernel: downconv_pallas.1
$region0: #{downconv_pallas.1}
  #allocation0 [shape = 'u32[]', space=smem, size = 0x4, offset = 0x4, fixed_abs, tag = 'smem constant byte address 0x4 - core index']
  #allocation1 [shape = 'u32[144,128]{1,0:T(1,128)}', space=vmem, size = 0x12000, scoped, tag = 'internal scratch']
  %s0 = inlined_call_operand.vmem [shape: bf16[2,512,32], index: 0, kind: input, shape index: {}]
  %s1 = inlined_call_operand.vmem [shape: bf16[32,128], index: 1, kind: input, shape index: {}]
  %s2 = inlined_call_operand.vmem [shape: f32[2,128], index: 2, kind: input, shape index: {}]
  %s3 = inlined_call_operand.vmem [shape: f32[2,8,512], index: 3, kind: output, shape index: {}]
  %s4 = sld [smem:[#allocation0]]
  $region45: #{downconv_pallas.1} parent=0
    _
  %s6 = ssub.s32 1, %s4
  %s7 = scalar_select 0, %s6, %s4
  loop: start=0, step=1, limit=4
  $region2: #{downconv_pallas.1} parent=0 // loop_pre_header
    _
  $region3: #{downconv_pallas.1} parent=0 // loop_header
    %s9 = sphi 0, %s13
    %p10 = scmp.ge.s32.totalorder %s9, 4
    %s16 = sphi 0, %s28
    %s17 = sphi 0, %s24
    %s18 = sphi 0, %s16
    %s19 = sphi 0, %s17
    %s20 = sphi 0, %s18
    %s21 = sphi 0, %s19
    %s33 = sphi 0, %s35
    %s36 = sphi 0, %s33
    %s37 = sphi 0, %s36
    %s53 = sphi 0, %s37
    %s57 = sphi 0, %s57
    %s59 = sphi 0, %s57
    %s60 = sphi 0, %s59
    %s74 = sphi 0, %s60
    %s78 = sphi 0, %s78
    %s80 = sphi 0, %s78
    %s81 = sphi 0, %s80
    %s95 = sphi 0, %s81
    %s103 = sphi 0, %s105
    %s106 = sphi 0, %s103
    %s107 = sphi 0, %s106
    %s123 = sphi 0, %s107
  $region4: #{downconv_pallas.1} parent=0 // loop_header_branch
    %12 = sbr.rel (%p10) target = $region8
  $region5: #{downconv_pallas.1} parent=0 // loop_body
    %s14 = ssub.s32 %s9, 1
    %s15 = ssub.s32 %s9, 2
    %s22 = sadd.s32 1, %s17
    %p23 = scmp.ge.s32.totalorder %s22, 1
    %s24 = scalar_select %p23, 0, %s22
    %s25 = sadd.s32 1, %s16
    %s26 = scalar_select %p23, %s25, %s16
    %p27 = scmp.ge.s32.totalorder %s26, 2
    %s28 = scalar_select %p27, 0, %s26
    %s29 = ssub.s32 %s16, %s28
    %s30 = ssub.s32 %s17, %s24
    %s31 = sor.u32 %s29, %s30
    %p32 = scmp.eq.s32.totalorder %s31, 0
    %s34 = sadd.s32 %s33, 1
    %s35 = scalar_select %p32, %s33, %s34
    %p38 = pneg %p32
    %p39 = scmp.eq.s32.totalorder %s9, 1
    %p40 = por %p38, %p39
    %p41 = scmp.ne.s32.totalorder %s33, %s36
    %p42 = scmp.eq.s32.totalorder %s9, 0
    %p43 = por %p41, %p42
    %p44 = scmp.ne.s32.totalorder %s33, %s36
    %p45 = scmp.eq.s32.totalorder %s14, 1
    %p46 = por %p44, %p45
    %p47 = scmp.ne.s32.totalorder %s36, %s37
    %p48 = scmp.eq.s32.totalorder %s14, 0
    %p49 = por %p47, %p48
    %p50 = scmp.ne.s32.totalorder %s36, %s37
    %p51 = scmp.eq.s32.totalorder %s15, 1
    %p52 = por %p50, %p51
    %p54 = scmp.ne.s32.totalorder %s37, %s53
    %p55 = scmp.eq.s32.totalorder %s15, 0
    %p56 = por %p54, %p55
    %s58 = sadd.s32 %s57, 1
    %p61 = scmp.eq.s32.totalorder %s9, 1
    %p62 = scmp.ne.s32.totalorder %s57, %s59
    %p63 = scmp.eq.s32.totalorder %s9, 0
    %p64 = por %p62, %p63
    %p65 = scmp.ne.s32.totalorder %s57, %s59
    %p66 = scmp.eq.s32.totalorder %s14, 1
    %p67 = por %p65, %p66
    %p68 = scmp.ne.s32.totalorder %s59, %s60
    %p69 = scmp.eq.s32.totalorder %s14, 0
    %p70 = por %p68, %p69
    %p71 = scmp.ne.s32.totalorder %s59, %s60
    %p72 = scmp.eq.s32.totalorder %s15, 1
    %p73 = por %p71, %p72
    %p75 = scmp.ne.s32.totalorder %s60, %s74
    %p76 = scmp.eq.s32.totalorder %s15, 0
    %p77 = por %p75, %p76
    %s79 = sadd.s32 %s78, 1
    %p82 = scmp.eq.s32.totalorder %s9, 1
    %p83 = scmp.ne.s32.totalorder %s78, %s80
    %p84 = scmp.eq.s32.totalorder %s9, 0
    %p85 = por %p83, %p84
    %p86 = scmp.ne.s32.totalorder %s78, %s80
    %p87 = scmp.eq.s32.totalorder %s14, 1
    %p88 = por %p86, %p87
    %p89 = scmp.ne.s32.totalorder %s80, %s81
    %p90 = scmp.eq.s32.totalorder %s14, 0
    %p91 = por %p89, %p90
    %p92 = scmp.ne.s32.totalorder %s80, %s81
    %p93 = scmp.eq.s32.totalorder %s15, 1
    %p94 = por %p92, %p93
    %p96 = scmp.ne.s32.totalorder %s81, %s95
    %p97 = scmp.eq.s32.totalorder %s15, 0
    %p98 = por %p96, %p97
    %s99 = ssub.s32 %s16, %s28
    %s100 = ssub.s32 %s17, %s24
    %s101 = sor.u32 %s99, %s100
    %p102 = scmp.eq.s32.totalorder %s101, 0
    %s104 = sadd.s32 %s103, 1
    %s105 = scalar_select %p102, %s103, %s104
    %p108 = pneg %p102
    %p109 = scmp.eq.s32.totalorder %s9, 1
    %p110 = por %p108, %p109
    %p111 = scmp.ne.s32.totalorder %s103, %s106
    %p112 = scmp.eq.s32.totalorder %s9, 0
    %p113 = por %p111, %p112
    %p114 = scmp.ne.s32.totalorder %s103, %s106
    %p115 = scmp.eq.s32.totalorder %s14, 1
    %p116 = por %p114, %p115
    %p117 = scmp.ne.s32.totalorder %s106, %s107
    %p118 = scmp.eq.s32.totalorder %s14, 0
    %p119 = por %p117, %p118
    %p120 = scmp.ne.s32.totalorder %s106, %s107
    %p121 = scmp.eq.s32.totalorder %s15, 1
    %p122 = por %p120, %p121
    %p124 = scmp.ne.s32.totalorder %s107, %s123
    %p125 = scmp.eq.s32.totalorder %s15, 0
    %p126 = por %p124, %p125
    %p127 = scmp.le.s32.totalorder 1, %s9
    %p128 = scmp.lt.s32.totalorder %s9, 3
    %p129 = pnand %p127, %p128
    %p130 = pneg %p129
    // Predicated region
    $region9: #{downconv_pallas.1} parent=5 // pred_check
      _
    $region10: #{downconv_pallas.1} parent=5 // pred_check_branch
      %132 = sbr.rel (%p129) target = $region12
    $region11: #{downconv_pallas.1} parent=5 // pred_region
      %s133 = ssub.s32 %s9, 1
      // Predicated region
      $region13: #{downconv_pallas.1} parent=11 // pred_check
        %p134 = pneg %p70
      $region14: #{downconv_pallas.1} parent=11 // pred_check_branch
        %136 = sbr.rel (%p134) target = $region16
      $region15: #{downconv_pallas.1} parent=11 // pred_region
        _
      $region16: #{downconv_pallas.1} parent=11 // pred_fallthru
        _
      // Predicated region
      $region17: #{downconv_pallas.1} parent=11 // pred_check
        %p137 = pneg %p91
      $region18: #{downconv_pallas.1} parent=11 // pred_check_branch
        %139 = sbr.rel (%p137) target = $region20
      $region19: #{downconv_pallas.1} parent=11 // pred_region
        _
      $region20: #{downconv_pallas.1} parent=11 // pred_fallthru
        _
    $region12: #{downconv_pallas.1} parent=5 // pred_fallthru
      _
    %p140 = scmp.lt.s32.totalorder %s9, 2
    // Predicated region
    $region21: #{downconv_pallas.1} parent=5 // pred_check
      %p141 = pneg %p140
    $region22: #{downconv_pallas.1} parent=5 // pred_check_branch
      %143 = sbr.rel (%p141) target = $region24
    $region23: #{downconv_pallas.1} parent=5 // pred_region
      // Predicated region
      $region25: #{downconv_pallas.1} parent=23 // pred_check
        %p144 = pneg %p43
      $region26: #{downconv_pallas.1} parent=23 // pred_check_branch
        %146 = sbr.rel (%p144) target = $region28
      $region27: #{downconv_pallas.1} parent=23 // pred_region
        %s147 = smul.u32 64, %s17
        %p148 = scmp.lt.s32.totalorder %s16, 1
        %s149 = scalar_select %p148, %s16, 1
        %p150 = scmp.lt.s32.totalorder %s147, 63
        %s151 = scalar_select %p150, %s147, 63
        %s152 = smul.addr %s149, 64
        %s153 = sadd.s32 %s151, %s152
        %s154 = smul.addr %s153, 4
        %s155 = scalar_lea.vmem %s0, %s154
        %s156 = smul.u32 64, %s17
      $region28: #{downconv_pallas.1} parent=23 // pred_fallthru
        _
    $region24: #{downconv_pallas.1} parent=5 // pred_fallthru
      _
    %p157 = scmp.le.s32.totalorder 1, %s9
    %p158 = scmp.lt.s32.totalorder %s9, 3
    %p159 = pnand %p157, %p158
    %p160 = pneg %p159
    // Predicated region
    $region29: #{downconv_pallas.1} parent=5 // pred_check
      _
    $region30: #{downconv_pallas.1} parent=5 // pred_check_branch
      %162 = sbr.rel (%p159) target = $region32
    $region31: #{downconv_pallas.1} parent=5 // pred_region
      %s163 = ssub.s32 %s9, 1
      %s164 = smul.u32 64, %s19
      %p165 = scmp.lt.s32.totalorder %s18, 1
      %s166 = scalar_select %p165, %s18, 1
      %p167 = scmp.lt.s32.totalorder %s164, 63
      %s168 = scalar_select %p167, %s164, 63
      %s169 = smul.addr %s166, 64
      %s170 = sadd.s32 %s168, %s169
      %s171 = smul.addr %s170, 4
      %s172 = scalar_lea.vmem %s0, %s171
      %p173 = pneg %p49
      %p174 = pneg %p46
      %p175 = pneg %p70
      %p176 = pneg %p67
      %p177 = pneg %p91
      %p178 = pneg %p88
      %p179 = pneg %p119
      %p180 = pneg %p116
      %s181 = smul.u32 4, %s19
      %p182 = scmp.lt.s32.totalorder %s18, 1
      %s183 = scalar_select %p182, %s18, 1
      %p184 = scmp.lt.s32.totalorder %s181, 3
      %s185 = scalar_select %p184, %s181, 3
      %s186 = smul.addr %s183, 4
      %s187 = sadd.s32 %s185, %s186
      %s188 = smul.addr %s187, 8
      %s189 = scalar_lea.vmem %s3, %s188
      %s190 = smul.u32 64, %s19
      %p191 = scmp.lt.s32.totalorder %s18, 1
      %s192 = scalar_select %p191, %s18, 1
      %p193 = scmp.lt.s32.totalorder %s190, 63
      %s194 = scalar_select %p193, %s190, 63
      %s195 = smul.addr %s192, 64
      %s196 = sadd.s32 %s194, %s195
      %s197 = smul.addr %s196, 4
      %s198 = scalar_lea.vmem %s0, %s197
      %s199 = smul.u32 64, %s19
      %s200 = smul.u32 4, %s19
      %p201 = scmp.lt.s32.totalorder %s18, 1
      %s202 = scalar_select %p201, %s18, 1
      %p203 = scmp.lt.s32.totalorder %s200, 3
      %s204 = scalar_select %p203, %s200, 3
      %s205 = smul.addr %s202, 4
      %s206 = sadd.s32 %s204, %s205
      %s207 = smul.addr %s206, 8
      %s208 = scalar_lea.vmem %s3, %s207
      %s209 = smul.u32 4, %s19
      %v211 = vld [vmem:[%s198] sm:$0xf]
      %v212 = vld [vmem:[%s198 + $0x4] sm:$0xf]
      %v213 = vld [vmem:[%s198 + $0x8] sm:$0xf]
      %v214 = vld [vmem:[%s198 + $0xc] sm:$0xf]
      %v215 = vld [vmem:[%s198 + $0x10] sm:$0xf]
      %v216 = vld [vmem:[%s198 + $0x14] sm:$0xf]
      %v217 = vld [vmem:[%s198 + $0x18] sm:$0xf]
      %v218 = vld [vmem:[%s198 + $0x1c] sm:$0xf]
      %v219 = vld [vmem:[%s198 + $0x20] sm:$0xf]
      %v220 = vld [vmem:[%s198 + $0x24] sm:$0xf]
      %v221 = vld [vmem:[%s198 + $0x28] sm:$0xf]
      %v222 = vld [vmem:[%s198 + $0x2c] sm:$0xf]
      %v223 = vld [vmem:[%s198 + $0x30] sm:$0xf]
      %v224 = vld [vmem:[%s198 + $0x34] sm:$0xf]
      %v225 = vld [vmem:[%s198 + $0x38] sm:$0xf]
      %v226 = vld [vmem:[%s198 + $0x3c] sm:$0xf]
      %v227 = vld [vmem:[%s198 + $0x40] sm:$0xf]
      %v228 = vld [vmem:[%s198 + $0x44] sm:$0xf]
      %v229 = vld [vmem:[%s198 + $0x48] sm:$0xf]
      %v230 = vld [vmem:[%s198 + $0x4c] sm:$0xf]
      %v231 = vld [vmem:[%s198 + $0x50] sm:$0xf]
      %v232 = vld [vmem:[%s198 + $0x54] sm:$0xf]
      %v233 = vld [vmem:[%s198 + $0x58] sm:$0xf]
      %v234 = vld [vmem:[%s198 + $0x5c] sm:$0xf]
      %v235 = vld [vmem:[%s198 + $0x60] sm:$0xf]
      %v236 = vld [vmem:[%s198 + $0x64] sm:$0xf]
      %v237 = vld [vmem:[%s198 + $0x68] sm:$0xf]
      %v238 = vld [vmem:[%s198 + $0x6c] sm:$0xf]
      %v239 = vld [vmem:[%s198 + $0x70] sm:$0xf]
      %v240 = vld [vmem:[%s198 + $0x74] sm:$0xf]
      %v241 = vld [vmem:[%s198 + $0x78] sm:$0xf]
      %v242 = vld [vmem:[%s198 + $0x7c] sm:$0xf]
      %v243 = vld [vmem:[%s198 + $0x80] sm:$0xf]
      %v244 = vld [vmem:[%s198 + $0x84] sm:$0xf]
      %v245 = vld [vmem:[%s198 + $0x88] sm:$0xf]
      %v246 = vld [vmem:[%s198 + $0x8c] sm:$0xf]
      %v247 = vld [vmem:[%s198 + $0x90] sm:$0xf]
      %v248 = vld [vmem:[%s198 + $0x94] sm:$0xf]
      %v249 = vld [vmem:[%s198 + $0x98] sm:$0xf]
      %v250 = vld [vmem:[%s198 + $0x9c] sm:$0xf]
      %v251 = vld [vmem:[%s198 + $0xa0] sm:$0xf]
      %v252 = vld [vmem:[%s198 + $0xa4] sm:$0xf]
      %v253 = vld [vmem:[%s198 + $0xa8] sm:$0xf]
      %v254 = vld [vmem:[%s198 + $0xac] sm:$0xf]
      %v255 = vld [vmem:[%s198 + $0xb0] sm:$0xf]
      %v256 = vld [vmem:[%s198 + $0xb4] sm:$0xf]
      %v257 = vld [vmem:[%s198 + $0xb8] sm:$0xf]
      %v258 = vld [vmem:[%s198 + $0xbc] sm:$0xf]
      %v259 = vld [vmem:[%s198 + $0xc0] sm:$0xf]
      %v260 = vld [vmem:[%s198 + $0xc4] sm:$0xf]
      %v261 = vld [vmem:[%s198 + $0xc8] sm:$0xf]
      %v262 = vld [vmem:[%s198 + $0xcc] sm:$0xf]
      %v263 = vld [vmem:[%s198 + $0xd0] sm:$0xf]
      %v264 = vld [vmem:[%s198 + $0xd4] sm:$0xf]
      %v265 = vld [vmem:[%s198 + $0xd8] sm:$0xf]
      %v266 = vld [vmem:[%s198 + $0xdc] sm:$0xf]
      %v267 = vld [vmem:[%s198 + $0xe0] sm:$0xf]
      %v268 = vld [vmem:[%s198 + $0xe4] sm:$0xf]
      %v269 = vld [vmem:[%s198 + $0xe8] sm:$0xf]
      %v270 = vld [vmem:[%s198 + $0xec] sm:$0xf]
      %v271 = vld [vmem:[%s198 + $0xf0] sm:$0xf]
      %v272 = vld [vmem:[%s198 + $0xf4] sm:$0xf]
      %v273 = vld [vmem:[%s198 + $0xf8] sm:$0xf]
      %v274 = vld [vmem:[%s198 + $0xfc] sm:$0xf]
      %v275 = vld [vmem:[%s1] sm:$0xf]
      %v276 = vld [vmem:[%s1 + $0x4] sm:$0xf]
      %v277 = vld [vmem:[%s1 + $0x8] sm:$0xf]
      %v278 = vld [vmem:[%s1 + $0xc] sm:$0xf]
      %v279 = vld [vmem:[%s2] sm:$0x3]
      %v280 = vlaneseq
      %v281 = vshrl.u32 %v280, 7
      %v282 = vsub.s32 0, %v281
      %v283 = vrot.slane %v279, %v282
      %v348 = vunpack.c.l.b16 %v211
      %v349 = vunpack.c.l.b16 %v212
      %v350 = vunpack.c.l.b16 %v213
      %v351 = vunpack.c.l.b16 %v214
      %v352 = vunpack.c.l.b16 %v215
      %v353 = vunpack.c.l.b16 %v216
      %v354 = vunpack.c.l.b16 %v217
      %v355 = vunpack.c.l.b16 %v218
      %v356 = vunpack.c.l.b16 %v219
      %v357 = vunpack.c.l.b16 %v220
      %v358 = vunpack.c.l.b16 %v221
      %v359 = vunpack.c.l.b16 %v222
      %v360 = vunpack.c.l.b16 %v223
      %v361 = vunpack.c.l.b16 %v224
      %v362 = vunpack.c.l.b16 %v225
      %v363 = vunpack.c.l.b16 %v226
      %v364 = vunpack.c.l.b16 %v227
      %v365 = vunpack.c.l.b16 %v228
      %v366 = vunpack.c.l.b16 %v229
      %v367 = vunpack.c.l.b16 %v230
      %v368 = vunpack.c.l.b16 %v231
      %v369 = vunpack.c.l.b16 %v232
      %v370 = vunpack.c.l.b16 %v233
      %v371 = vunpack.c.l.b16 %v234
      %v372 = vunpack.c.l.b16 %v235
      %v373 = vunpack.c.l.b16 %v236
      %v374 = vunpack.c.l.b16 %v237
      %v375 = vunpack.c.l.b16 %v238
      %v376 = vunpack.c.l.b16 %v239
      %v377 = vunpack.c.l.b16 %v240
      %v378 = vunpack.c.l.b16 %v241
      %v379 = vunpack.c.l.b16 %v242
      %v380 = vunpack.c.l.b16 %v243
      %v381 = vunpack.c.l.b16 %v244
      %v382 = vunpack.c.l.b16 %v245
      %v383 = vunpack.c.l.b16 %v246
      %v384 = vunpack.c.l.b16 %v247
      %v385 = vunpack.c.l.b16 %v248
      %v386 = vunpack.c.l.b16 %v249
      %v387 = vunpack.c.l.b16 %v250
      %v388 = vunpack.c.l.b16 %v251
      %v389 = vunpack.c.l.b16 %v252
      %v390 = vunpack.c.l.b16 %v253
      %v391 = vunpack.c.l.b16 %v254
      %v392 = vunpack.c.l.b16 %v255
      %v393 = vunpack.c.l.b16 %v256
      %v394 = vunpack.c.l.b16 %v257
      %v395 = vunpack.c.l.b16 %v258
      %v396 = vunpack.c.l.b16 %v259
      %v397 = vunpack.c.l.b16 %v260
      %v398 = vunpack.c.l.b16 %v261
      %v399 = vunpack.c.l.b16 %v262
      %v400 = vunpack.c.l.b16 %v263
      %v401 = vunpack.c.l.b16 %v264
      %v402 = vunpack.c.l.b16 %v265
      %v403 = vunpack.c.l.b16 %v266
      %v404 = vunpack.c.l.b16 %v267
      %v405 = vunpack.c.l.b16 %v268
      %v406 = vunpack.c.l.b16 %v269
      %v407 = vunpack.c.l.b16 %v270
      %v408 = vunpack.c.l.b16 %v271
      %v409 = vunpack.c.l.b16 %v272
      %v410 = vunpack.c.l.b16 %v273
      %v411 = vunpack.c.l.b16 %v274
      %v412 = vpack.c.b16 %v349, %v348
      %v413 = vpack.c.b16 %v351, %v350
      %v414 = vpack.c.b16 %v353, %v352
      %v415 = vpack.c.b16 %v355, %v354
      %v416 = vpack.c.b16 %v357, %v356
      %v417 = vpack.c.b16 %v359, %v358
      %v418 = vpack.c.b16 %v361, %v360
      %v419 = vpack.c.b16 %v363, %v362
      %v420 = vpack.c.b16 %v365, %v364
      %v421 = vpack.c.b16 %v367, %v366
      %v422 = vpack.c.b16 %v369, %v368
      %v423 = vpack.c.b16 %v371, %v370
      %v424 = vpack.c.b16 %v373, %v372
      %v425 = vpack.c.b16 %v375, %v374
      %v426 = vpack.c.b16 %v377, %v376
      %v427 = vpack.c.b16 %v379, %v378
      %v428 = vpack.c.b16 %v381, %v380
      %v429 = vpack.c.b16 %v383, %v382
      %v430 = vpack.c.b16 %v385, %v384
      %v431 = vpack.c.b16 %v387, %v386
      %v432 = vpack.c.b16 %v389, %v388
      %v433 = vpack.c.b16 %v391, %v390
      %v434 = vpack.c.b16 %v393, %v392
      %v435 = vpack.c.b16 %v395, %v394
      %v436 = vpack.c.b16 %v397, %v396
      %v437 = vpack.c.b16 %v399, %v398
      %v438 = vpack.c.b16 %v401, %v400
      %v439 = vpack.c.b16 %v403, %v402
      %v440 = vpack.c.b16 %v405, %v404
      %v441 = vpack.c.b16 %v407, %v406
      %v442 = vpack.c.b16 %v409, %v408
      %v443 = vpack.c.b16 %v411, %v410
      %v448 = vunpack.c.l.b16 %v275
      %v449 = vunpack.c.l.b16 %v276
      %v450 = vunpack.c.l.b16 %v277
      %v451 = vunpack.c.l.b16 %v278
      %v452 = vpack.c.b16 %v449, %v448
      %v453 = vpack.c.b16 %v451, %v450
      %vm456 = vcmask 261120
      %v458 = vsel %vm456, %v412, 0
      %v461 = vsel %vm456, %v413, 0
      %v464 = vsel %vm456, %v414, 0
      %v467 = vsel %vm456, %v415, 0
      %v470 = vsel %vm456, %v416, 0
      %v473 = vsel %vm456, %v417, 0
      %v476 = vsel %vm456, %v418, 0
      %v479 = vsel %vm456, %v419, 0
      %v482 = vsel %vm456, %v420, 0
      %v485 = vsel %vm456, %v421, 0
      %v488 = vsel %vm456, %v422, 0
      %v491 = vsel %vm456, %v423, 0
      %v494 = vsel %vm456, %v424, 0
      %v497 = vsel %vm456, %v425, 0
      %v500 = vsel %vm456, %v426, 0
      %v503 = vsel %vm456, %v427, 0
      %v506 = vsel %vm456, %v428, 0
      %v509 = vsel %vm456, %v429, 0
      %v512 = vsel %vm456, %v430, 0
      %v515 = vsel %vm456, %v431, 0
      %v518 = vsel %vm456, %v432, 0
      %v521 = vsel %vm456, %v433, 0
      %v524 = vsel %vm456, %v434, 0
      %v527 = vsel %vm456, %v435, 0
      %v530 = vsel %vm456, %v436, 0
      %v533 = vsel %vm456, %v437, 0
      %v536 = vsel %vm456, %v438, 0
      %v539 = vsel %vm456, %v439, 0
      %v542 = vsel %vm456, %v440, 0
      %v545 = vsel %vm456, %v441, 0
      %v548 = vsel %vm456, %v442, 0
      %v551 = vsel %vm456, %v443, 0
      %553 = vmatprep.subr.bf16.mxu0 0
      %554 = vmatpush1.bf16.msra.mxu0 %v452
      %555 = vmatprep.subr.bf16.mxu0 0
      %556 = vmatpush1.bf16.msra.mxu0 %v453
      %557 = vmatprep.subr.bf16.mxu0 0
      %558 = vmatpush1.bf16.msra.mxu0 0
      %559 = vmatprep.subr.bf16.mxu0 0
      %560 = vmatpush1.bf16.msra.mxu0 0
      %561 = vmatprep.subr.bf16.mxu0 0
      %562 = vmatpush1.bf16.msra.mxu0 0
      %563 = vmatprep.subr.bf16.mxu0 0
      %564 = vmatpush1.bf16.msra.mxu0 0
      %565 = vmatprep.subr.bf16.mxu0 0
      %566 = vmatpush1.bf16.msra.mxu0 0
      %567 = vmatprep.subr.bf16.mxu0 0
      %568 = vmatpush1.bf16.msra.mxu0 0
      %569 = vmatprep.subr.bf16.mxu0 0
      %570 = vmatpush1.bf16.msra.mxu0 0
      %571 = vmatprep.subr.bf16.mxu0 0
      %572 = vmatpush1.bf16.msra.mxu0 0
      %573 = vmatprep.subr.bf16.mxu0 0
      %574 = vmatpush1.bf16.msra.mxu0 0
      %575 = vmatprep.subr.bf16.mxu0 0
      %576 = vmatpush1.bf16.msra.mxu0 0
      %577 = vmatprep.subr.bf16.mxu0 0
      %578 = vmatpush1.bf16.msra.mxu0 0
      %579 = vmatprep.subr.bf16.mxu0 0
      %580 = vmatpush1.bf16.msra.mxu0 0
      %581 = vmatprep.subr.bf16.mxu0 0
      %582 = vmatpush1.bf16.msra.mxu0 0
      %583 = vmatprep.subr.bf16.mxu0 0
      %584 = vmatpush1.bf16.msra.mxu0 0
      %585 = vmatprep.mubr.bf16.mxu0 0
      %586 = vmatmul.mubr.bf16.gmra.mrb[0].mxu0 %v458
      %v587 = vpop.f32.mrb[0].mxu0
      %v588 = vadd.f32 %v283, %v587
      %v589 = vpop.f32.mrb[0].mxu0
      %v590 = vpop.f32.mrb[0].mxu0
      %v591 = vadd.f32 %v283, %v590
      %v592 = vpop.f32.mrb[0].mxu0
      %593 = vmatprep.mubr.bf16.mxu0 0
      %594 = vmatmul.mubr.bf16.gmra.mrb[0].mxu0 %v461
      %v595 = vpop.f32.mrb[0].mxu0
      %v596 = vadd.f32 %v283, %v595
      %v597 = vpop.f32.mrb[0].mxu0
      %v598 = vpop.f32.mrb[0].mxu0
      %v599 = vadd.f32 %v283, %v598
      %v600 = vpop.f32.mrb[0].mxu0
      %601 = vmatprep.mubr.bf16.mxu0 0
      %602 = vmatmul.mubr.bf16.gmra.mrb[0].mxu0 %v464
      %v603 = vpop.f32.mrb[0].mxu0
      %v604 = vadd.f32 %v283, %v603
      %v605 = vpop.f32.mrb[0].mxu0
      %v606 = vpop.f32.mrb[0].mxu0
      %v607 = vadd.f32 %v283, %v606
      %v608 = vpop.f32.mrb[0].mxu0
      %609 = vmatprep.mubr.bf16.mxu0 0
      %610 = vmatmul.mubr.bf16.gmra.mrb[0].mxu0 %v467
      %v611 = vpop.f32.mrb[0].mxu0
      %v612 = vadd.f32 %v283, %v611
      %v613 = vpop.f32.mrb[0].mxu0
      %v614 = vpop.f32.mrb[0].mxu0
      %v615 = vadd.f32 %v283, %v614
      %v616 = vpop.f32.mrb[0].mxu0
      %617 = vmatprep.mubr.bf16.mxu0 0
      %618 = vmatmul.mubr.bf16.gmra.mrb[0].mxu0 %v470
      %v619 = vpop.f32.mrb[0].mxu0
      %v620 = vadd.f32 %v283, %v619
      %v621 = vpop.f32.mrb[0].mxu0
      %v622 = vpop.f32.mrb[0].mxu0
      %v623 = vadd.f32 %v283, %v622
      %v624 = vpop.f32.mrb[0].mxu0
      %625 = vmatprep.mubr.bf16.mxu0 0
      %626 = vmatmul.mubr.bf16.gmra.mrb[0].mxu0 %v473
      %v627 = vpop.f32.mrb[0].mxu0
      %v628 = vadd.f32 %v283, %v627
      %v629 = vpop.f32.mrb[0].mxu0
      %v630 = vpop.f32.mrb[0].mxu0
      %v631 = vadd.f32 %v283, %v630
      %v632 = vpop.f32.mrb[0].mxu0
      %633 = vmatprep.mubr.bf16.mxu0 0
      %634 = vmatmul.mubr.bf16.gmra.mrb[0].mxu0 %v476
      %v635 = vpop.f32.mrb[0].mxu0
      %v636 = vadd.f32 %v283, %v635
      %v637 = vpop.f32.mrb[0].mxu0
      %v638 = vpop.f32.mrb[0].mxu0
      %v639 = vadd.f32 %v283, %v638
      %v640 = vpop.f32.mrb[0].mxu0
      %641 = vmatprep.mubr.bf16.mxu0 0
      %642 = vmatmul.mubr.bf16.gmra.mrb[0].mxu0 %v479
      %v643 = vpop.f32.mrb[0].mxu0
      %v644 = vadd.f32 %v283, %v643
      %v645 = vpop.f32.mrb[0].mxu0
      %v646 = vpop.f32.mrb[0].mxu0
      %v647 = vadd.f32 %v283, %v646
      %v648 = vpop.f32.mrb[0].mxu0
      %649 = vmatprep.mubr.bf16.mxu0 0
      %650 = vmatmul.mubr.bf16.gmra.mrb[0].mxu0 %v482
      %v651 = vpop.f32.mrb[0].mxu0
      %v652 = vadd.f32 %v283, %v651
      %v653 = vpop.f32.mrb[0].mxu0
      %v654 = vpop.f32.mrb[0].mxu0
      %v655 = vadd.f32 %v283, %v654
      %v656 = vpop.f32.mrb[0].mxu0
      %657 = vmatprep.mubr.bf16.mxu0 0
      %658 = vmatmul.mubr.bf16.gmra.mrb[0].mxu0 %v485
      %v659 = vpop.f32.mrb[0].mxu0
      %v660 = vadd.f32 %v283, %v659
      %v661 = vpop.f32.mrb[0].mxu0
      %v662 = vpop.f32.mrb[0].mxu0
      %v663 = vadd.f32 %v283, %v662
      %v664 = vpop.f32.mrb[0].mxu0
      %665 = vmatprep.mubr.bf16.mxu0 0
      %666 = vmatmul.mubr.bf16.gmra.mrb[0].mxu0 %v488
      %v667 = vpop.f32.mrb[0].mxu0
      %v668 = vadd.f32 %v283, %v667
      %v669 = vpop.f32.mrb[0].mxu0
      %v670 = vpop.f32.mrb[0].mxu0
      %v671 = vadd.f32 %v283, %v670
      %v672 = vpop.f32.mrb[0].mxu0
      %673 = vmatprep.mubr.bf16.mxu0 0
      %674 = vmatmul.mubr.bf16.gmra.mrb[0].mxu0 %v491
      %v675 = vpop.f32.mrb[0].mxu0
      %v676 = vadd.f32 %v283, %v675
      %v677 = vpop.f32.mrb[0].mxu0
      %v678 = vpop.f32.mrb[0].mxu0
      %v679 = vadd.f32 %v283, %v678
      %v680 = vpop.f32.mrb[0].mxu0
      %681 = vmatprep.mubr.bf16.mxu0 0
      %682 = vmatmul.mubr.bf16.gmra.mrb[0].mxu0 %v494
      %v683 = vpop.f32.mrb[0].mxu0
      %v684 = vadd.f32 %v283, %v683
      %v685 = vpop.f32.mrb[0].mxu0
      %v686 = vpop.f32.mrb[0].mxu0
      %v687 = vadd.f32 %v283, %v686
      %v688 = vpop.f32.mrb[0].mxu0
      %689 = vmatprep.mubr.bf16.mxu0 0
      %690 = vmatmul.mubr.bf16.gmra.mrb[0].mxu0 %v497
      %v691 = vpop.f32.mrb[0].mxu0
      %v692 = vadd.f32 %v283, %v691
      %v693 = vpop.f32.mrb[0].mxu0
      %v694 = vpop.f32.mrb[0].mxu0
      %v695 = vadd.f32 %v283, %v694
      %v696 = vpop.f32.mrb[0].mxu0
      %697 = vmatprep.mubr.bf16.mxu0 0
      %698 = vmatmul.mubr.bf16.gmra.mrb[0].mxu0 %v500
      %v699 = vpop.f32.mrb[0].mxu0
      %v700 = vadd.f32 %v283, %v699
      %v701 = vpop.f32.mrb[0].mxu0
      %v702 = vpop.f32.mrb[0].mxu0
      %v703 = vadd.f32 %v283, %v702
      %v704 = vpop.f32.mrb[0].mxu0
      %705 = vmatprep.mubr.bf16.mxu0 0
      %706 = vmatmul.mubr.bf16.gmra.mrb[0].mxu0 %v503
      %v707 = vpop.f32.mrb[0].mxu0
      %v708 = vadd.f32 %v283, %v707
      %v709 = vpop.f32.mrb[0].mxu0
      %v710 = vpop.f32.mrb[0].mxu0
      %v711 = vadd.f32 %v283, %v710
      %v712 = vpop.f32.mrb[0].mxu0
      %713 = vmatprep.mubr.bf16.mxu0 0
      %714 = vmatmul.mubr.bf16.gmra.mrb[0].mxu0 %v506
      %v715 = vpop.f32.mrb[0].mxu0
      %v716 = vadd.f32 %v283, %v715
      %v717 = vpop.f32.mrb[0].mxu0
      %v718 = vpop.f32.mrb[0].mxu0
      %v719 = vadd.f32 %v283, %v718
      %v720 = vpop.f32.mrb[0].mxu0
      %721 = vmatprep.mubr.bf16.mxu0 0
      %722 = vmatmul.mubr.bf16.gmra.mrb[0].mxu0 %v509
      %v723 = vpop.f32.mrb[0].mxu0
      %v724 = vadd.f32 %v283, %v723
      %v725 = vpop.f32.mrb[0].mxu0
      %v726 = vpop.f32.mrb[0].mxu0
      %v727 = vadd.f32 %v283, %v726
      %v728 = vpop.f32.mrb[0].mxu0
      %729 = vmatprep.mubr.bf16.mxu0 0
      %730 = vmatmul.mubr.bf16.gmra.mrb[0].mxu0 %v512
      %v731 = vpop.f32.mrb[0].mxu0
      %v732 = vadd.f32 %v283, %v731
      %v733 = vpop.f32.mrb[0].mxu0
      %v734 = vpop.f32.mrb[0].mxu0
      %v735 = vadd.f32 %v283, %v734
      %v736 = vpop.f32.mrb[0].mxu0
      %737 = vmatprep.mubr.bf16.mxu0 0
      %738 = vmatmul.mubr.bf16.gmra.mrb[0].mxu0 %v515
      %v739 = vpop.f32.mrb[0].mxu0
      %v740 = vadd.f32 %v283, %v739
      %v741 = vpop.f32.mrb[0].mxu0
      %v742 = vpop.f32.mrb[0].mxu0
      %v743 = vadd.f32 %v283, %v742
      %v744 = vpop.f32.mrb[0].mxu0
      %745 = vmatprep.mubr.bf16.mxu0 0
      %746 = vmatmul.mubr.bf16.gmra.mrb[0].mxu0 %v518
      %v747 = vpop.f32.mrb[0].mxu0
      %v748 = vadd.f32 %v283, %v747
      %v749 = vpop.f32.mrb[0].mxu0
      %v750 = vpop.f32.mrb[0].mxu0
      %v751 = vadd.f32 %v283, %v750
      %v752 = vpop.f32.mrb[0].mxu0
      %753 = vmatprep.mubr.bf16.mxu0 0
      %754 = vmatmul.mubr.bf16.gmra.mrb[0].mxu0 %v521
      %v755 = vpop.f32.mrb[0].mxu0
      %v756 = vadd.f32 %v283, %v755
      %v757 = vpop.f32.mrb[0].mxu0
      %v758 = vpop.f32.mrb[0].mxu0
      %v759 = vadd.f32 %v283, %v758
      %v760 = vpop.f32.mrb[0].mxu0
      %761 = vmatprep.mubr.bf16.mxu0 0
      %762 = vmatmul.mubr.bf16.gmra.mrb[0].mxu0 %v524
      %v763 = vpop.f32.mrb[0].mxu0
      %v764 = vadd.f32 %v283, %v763
      %v765 = vpop.f32.mrb[0].mxu0
      %v766 = vpop.f32.mrb[0].mxu0
      %v767 = vadd.f32 %v283, %v766
      %v768 = vpop.f32.mrb[0].mxu0
      %769 = vmatprep.mubr.bf16.mxu0 0
      %770 = vmatmul.mubr.bf16.gmra.mrb[0].mxu0 %v527
      %v771 = vpop.f32.mrb[0].mxu0
      %v772 = vadd.f32 %v283, %v771
      %v773 = vpop.f32.mrb[0].mxu0
      %v774 = vpop.f32.mrb[0].mxu0
      %v775 = vadd.f32 %v283, %v774
      %v776 = vpop.f32.mrb[0].mxu0
      %777 = vmatprep.mubr.bf16.mxu0 0
      %778 = vmatmul.mubr.bf16.gmra.mrb[0].mxu0 %v530
      %v779 = vpop.f32.mrb[0].mxu0
      %v780 = vadd.f32 %v283, %v779
      %v781 = vpop.f32.mrb[0].mxu0
      %v782 = vpop.f32.mrb[0].mxu0
      %v783 = vadd.f32 %v283, %v782
      %v784 = vpop.f32.mrb[0].mxu0
      %785 = vmatprep.mubr.bf16.mxu0 0
      %786 = vmatmul.mubr.bf16.gmra.mrb[0].mxu0 %v533
      %v787 = vpop.f32.mrb[0].mxu0
      %v788 = vadd.f32 %v283, %v787
      %v789 = vpop.f32.mrb[0].mxu0
      %v790 = vpop.f32.mrb[0].mxu0
      %v791 = vadd.f32 %v283, %v790
      %v792 = vpop.f32.mrb[0].mxu0
      %793 = vmatprep.mubr.bf16.mxu0 0
      %794 = vmatmul.mubr.bf16.gmra.mrb[0].mxu0 %v536
      %v795 = vpop.f32.mrb[0].mxu0
      %v796 = vadd.f32 %v283, %v795
      %v797 = vpop.f32.mrb[0].mxu0
      %v798 = vpop.f32.mrb[0].mxu0
      %v799 = vadd.f32 %v283, %v798
      %v800 = vpop.f32.mrb[0].mxu0
      %801 = vmatprep.mubr.bf16.mxu0 0
      %802 = vmatmul.mubr.bf16.gmra.mrb[0].mxu0 %v539
      %v803 = vpop.f32.mrb[0].mxu0
      %v804 = vadd.f32 %v283, %v803
      %v805 = vpop.f32.mrb[0].mxu0
      %v806 = vpop.f32.mrb[0].mxu0
      %v807 = vadd.f32 %v283, %v806
      %v808 = vpop.f32.mrb[0].mxu0
      %809 = vmatprep.mubr.bf16.mxu0 0
      %810 = vmatmul.mubr.bf16.gmra.mrb[0].mxu0 %v542
      %v811 = vpop.f32.mrb[0].mxu0
      %v812 = vadd.f32 %v283, %v811
      %v813 = vpop.f32.mrb[0].mxu0
      %v814 = vpop.f32.mrb[0].mxu0
      %v815 = vadd.f32 %v283, %v814
      %v816 = vpop.f32.mrb[0].mxu0
      %817 = vmatprep.mubr.bf16.mxu0 0
      %818 = vmatmul.mubr.bf16.gmra.mrb[0].mxu0 %v545
      %v819 = vpop.f32.mrb[0].mxu0
      %v820 = vadd.f32 %v283, %v819
      %v821 = vpop.f32.mrb[0].mxu0
      %v822 = vpop.f32.mrb[0].mxu0
      %v823 = vadd.f32 %v283, %v822
      %v824 = vpop.f32.mrb[0].mxu0
      %825 = vmatprep.mubr.bf16.mxu0 0
      %826 = vmatmul.mubr.bf16.gmra.mrb[0].mxu0 %v548
      %v827 = vpop.f32.mrb[0].mxu0
      %v828 = vadd.f32 %v283, %v827
      %v829 = vpop.f32.mrb[0].mxu0
      %v830 = vpop.f32.mrb[0].mxu0
      %v831 = vadd.f32 %v283, %v830
      %v832 = vpop.f32.mrb[0].mxu0
      %833 = vmatprep.mubr.bf16.mxu0 0
      %834 = vmatmul.mubr.bf16.gmra.mrb[0].mxu0 %v551
      %v835 = vpop.f32.mrb[0].mxu0
      %v836 = vadd.f32 %v283, %v835
      %v837 = vpop.f32.mrb[0].mxu0
      %v838 = vpop.f32.mrb[0].mxu0
      %v839 = vadd.f32 %v283, %v838
      %v840 = vpop.f32.mrb[0].mxu0
      %841 = vdwg.mxu0
      %vm842 = vcmp.gt.f32.partialorder %v588, 0.0
      %vm843 = vcmp.gt.f32.partialorder %v591, 0.0
      %vm844 = vcmp.gt.f32.partialorder %v596, 0.0
      %vm845 = vcmp.gt.f32.partialorder %v599, 0.0
      %vm846 = vcmp.gt.f32.partialorder %v604, 0.0
      %vm847 = vcmp.gt.f32.partialorder %v607, 0.0
      %vm848 = vcmp.gt.f32.partialorder %v612, 0.0
      %vm849 = vcmp.gt.f32.partialorder %v615, 0.0
      %vm850 = vcmp.gt.f32.partialorder %v620, 0.0
      %vm851 = vcmp.gt.f32.partialorder %v623, 0.0
      %vm852 = vcmp.gt.f32.partialorder %v628, 0.0
      %vm853 = vcmp.gt.f32.partialorder %v631, 0.0
      %vm854 = vcmp.gt.f32.partialorder %v636, 0.0
      %vm855 = vcmp.gt.f32.partialorder %v639, 0.0
      %vm856 = vcmp.gt.f32.partialorder %v644, 0.0
      %vm857 = vcmp.gt.f32.partialorder %v647, 0.0
      %vm858 = vcmp.gt.f32.partialorder %v652, 0.0
      %vm859 = vcmp.gt.f32.partialorder %v655, 0.0
      %vm860 = vcmp.gt.f32.partialorder %v660, 0.0
      %vm861 = vcmp.gt.f32.partialorder %v663, 0.0
      %vm862 = vcmp.gt.f32.partialorder %v668, 0.0
      %vm863 = vcmp.gt.f32.partialorder %v671, 0.0
      %vm864 = vcmp.gt.f32.partialorder %v676, 0.0
      %vm865 = vcmp.gt.f32.partialorder %v679, 0.0
      %vm866 = vcmp.gt.f32.partialorder %v684, 0.0
      %vm867 = vcmp.gt.f32.partialorder %v687, 0.0
      %vm868 = vcmp.gt.f32.partialorder %v692, 0.0
      %vm869 = vcmp.gt.f32.partialorder %v695, 0.0
      %vm870 = vcmp.gt.f32.partialorder %v700, 0.0
      %vm871 = vcmp.gt.f32.partialorder %v703, 0.0
      %vm872 = vcmp.gt.f32.partialorder %v708, 0.0
      %vm873 = vcmp.gt.f32.partialorder %v711, 0.0
      %vm874 = vcmp.gt.f32.partialorder %v716, 0.0
      %vm875 = vcmp.gt.f32.partialorder %v719, 0.0
      %vm876 = vcmp.gt.f32.partialorder %v724, 0.0
      %vm877 = vcmp.gt.f32.partialorder %v727, 0.0
      %vm878 = vcmp.gt.f32.partialorder %v732, 0.0
      %vm879 = vcmp.gt.f32.partialorder %v735, 0.0
      %vm880 = vcmp.gt.f32.partialorder %v740, 0.0
      %vm881 = vcmp.gt.f32.partialorder %v743, 0.0
      %vm882 = vcmp.gt.f32.partialorder %v748, 0.0
      %vm883 = vcmp.gt.f32.partialorder %v751, 0.0
      %vm884 = vcmp.gt.f32.partialorder %v756, 0.0
      %vm885 = vcmp.gt.f32.partialorder %v759, 0.0
      %vm886 = vcmp.gt.f32.partialorder %v764, 0.0
      %vm887 = vcmp.gt.f32.partialorder %v767, 0.0
      %vm888 = vcmp.gt.f32.partialorder %v772, 0.0
      %vm889 = vcmp.gt.f32.partialorder %v775, 0.0
      %vm890 = vcmp.gt.f32.partialorder %v780, 0.0
      %vm891 = vcmp.gt.f32.partialorder %v783, 0.0
      %vm892 = vcmp.gt.f32.partialorder %v788, 0.0
      %vm893 = vcmp.gt.f32.partialorder %v791, 0.0
      %vm894 = vcmp.gt.f32.partialorder %v796, 0.0
      %vm895 = vcmp.gt.f32.partialorder %v799, 0.0
      %vm896 = vcmp.gt.f32.partialorder %v804, 0.0
      %vm897 = vcmp.gt.f32.partialorder %v807, 0.0
      %vm898 = vcmp.gt.f32.partialorder %v812, 0.0
      %vm899 = vcmp.gt.f32.partialorder %v815, 0.0
      %vm900 = vcmp.gt.f32.partialorder %v820, 0.0
      %vm901 = vcmp.gt.f32.partialorder %v823, 0.0
      %vm902 = vcmp.gt.f32.partialorder %v828, 0.0
      %vm903 = vcmp.gt.f32.partialorder %v831, 0.0
      %vm904 = vcmp.gt.f32.partialorder %v836, 0.0
      %vm905 = vcmp.gt.f32.partialorder %v839, 0.0
      %v906 = vlaneseq
      %v907 = vshrl.u32 %v906, 7
      %v908 = vsub.s32 1, %v907
      %v909 = vrot.slane %v279, %v908
      %v910 = vmul.f32 %v909, %v588
      %v911 = vmul.f32 %v909, %v591
      %v912 = vmul.f32 %v909, %v596
      %v913 = vmul.f32 %v909, %v599
      %v914 = vmul.f32 %v909, %v604
      %v915 = vmul.f32 %v909, %v607
      %v916 = vmul.f32 %v909, %v612
      %v917 = vmul.f32 %v909, %v615
      %v918 = vmul.f32 %v909, %v620
      %v919 = vmul.f32 %v909, %v623
      %v920 = vmul.f32 %v909, %v628
      %v921 = vmul.f32 %v909, %v631
      %v922 = vmul.f32 %v909, %v636
      %v923 = vmul.f32 %v909, %v639
      %v924 = vmul.f32 %v909, %v644
      %v925 = vmul.f32 %v909, %v647
      %v926 = vmul.f32 %v909, %v652
      %v927 = vmul.f32 %v909, %v655
      %v928 = vmul.f32 %v909, %v660
      %v929 = vmul.f32 %v909, %v663
      %v930 = vmul.f32 %v909, %v668
      %v931 = vmul.f32 %v909, %v671
      %v932 = vmul.f32 %v909, %v676
      %v933 = vmul.f32 %v909, %v679
      %v934 = vmul.f32 %v909, %v684
      %v935 = vmul.f32 %v909, %v687
      %v936 = vmul.f32 %v909, %v692
      %v937 = vmul.f32 %v909, %v695
      %v938 = vmul.f32 %v909, %v700
      %v939 = vmul.f32 %v909, %v703
      %v940 = vmul.f32 %v909, %v708
      %v941 = vmul.f32 %v909, %v711
      %v942 = vmul.f32 %v909, %v716
      %v943 = vmul.f32 %v909, %v719
      %v944 = vmul.f32 %v909, %v724
      %v945 = vmul.f32 %v909, %v727
      %v946 = vmul.f32 %v909, %v732
      %v947 = vmul.f32 %v909, %v735
      %v948 = vmul.f32 %v909, %v740
      %v949 = vmul.f32 %v909, %v743
      %v950 = vmul.f32 %v909, %v748
      %v951 = vmul.f32 %v909, %v751
      %v952 = vmul.f32 %v909, %v756
      %v953 = vmul.f32 %v909, %v759
      %v954 = vmul.f32 %v909, %v764
      %v955 = vmul.f32 %v909, %v767
      %v956 = vmul.f32 %v909, %v772
      %v957 = vmul.f32 %v909, %v775
      %v958 = vmul.f32 %v909, %v780
      %v959 = vmul.f32 %v909, %v783
      %v960 = vmul.f32 %v909, %v788
      %v961 = vmul.f32 %v909, %v791
      %v962 = vmul.f32 %v909, %v796
      %v963 = vmul.f32 %v909, %v799
      %v964 = vmul.f32 %v909, %v804
      %v965 = vmul.f32 %v909, %v807
      %v966 = vmul.f32 %v909, %v812
      %v967 = vmul.f32 %v909, %v815
      %v968 = vmul.f32 %v909, %v820
      %v969 = vmul.f32 %v909, %v823
      %v970 = vmul.f32 %v909, %v828
      %v971 = vmul.f32 %v909, %v831
      %v972 = vmul.f32 %v909, %v836
      %v973 = vmul.f32 %v909, %v839
      %v974 = vsel %vm842, %v588, %v910
      %v975 = vsel %vm843, %v591, %v911
      %v976 = vsel %vm844, %v596, %v912
      %v977 = vsel %vm845, %v599, %v913
      %v978 = vsel %vm846, %v604, %v914
      %v979 = vsel %vm847, %v607, %v915
      %v980 = vsel %vm848, %v612, %v916
      %v981 = vsel %vm849, %v615, %v917
      %v982 = vsel %vm850, %v620, %v918
      %v983 = vsel %vm851, %v623, %v919
      %v984 = vsel %vm852, %v628, %v920
      %v985 = vsel %vm853, %v631, %v921
      %v986 = vsel %vm854, %v636, %v922
      %v987 = vsel %vm855, %v639, %v923
      %v988 = vsel %vm856, %v644, %v924
      %v989 = vsel %vm857, %v647, %v925
      %v990 = vsel %vm858, %v652, %v926
      %v991 = vsel %vm859, %v655, %v927
      %v992 = vsel %vm860, %v660, %v928
      %v993 = vsel %vm861, %v663, %v929
      %v994 = vsel %vm862, %v668, %v930
      %v995 = vsel %vm863, %v671, %v931
      %v996 = vsel %vm864, %v676, %v932
      %v997 = vsel %vm865, %v679, %v933
      %v998 = vsel %vm866, %v684, %v934
      %v999 = vsel %vm867, %v687, %v935
      %v1000 = vsel %vm868, %v692, %v936
      %v1001 = vsel %vm869, %v695, %v937
      %v1002 = vsel %vm870, %v700, %v938
      %v1003 = vsel %vm871, %v703, %v939
      %v1004 = vsel %vm872, %v708, %v940
      %v1005 = vsel %vm873, %v711, %v941
      %v1006 = vsel %vm874, %v716, %v942
      %v1007 = vsel %vm875, %v719, %v943
      %v1008 = vsel %vm876, %v724, %v944
      %v1009 = vsel %vm877, %v727, %v945
      %v1010 = vsel %vm878, %v732, %v946
      %v1011 = vsel %vm879, %v735, %v947
      %v1012 = vsel %vm880, %v740, %v948
      %v1013 = vsel %vm881, %v743, %v949
      %v1014 = vsel %vm882, %v748, %v950
      %v1015 = vsel %vm883, %v751, %v951
      %v1016 = vsel %vm884, %v756, %v952
      %v1017 = vsel %vm885, %v759, %v953
      %v1018 = vsel %vm886, %v764, %v954
      %v1019 = vsel %vm887, %v767, %v955
      %v1020 = vsel %vm888, %v772, %v956
      %v1021 = vsel %vm889, %v775, %v957
      %v1022 = vsel %vm890, %v780, %v958
      %v1023 = vsel %vm891, %v783, %v959
      %v1024 = vsel %vm892, %v788, %v960
      %v1025 = vsel %vm893, %v791, %v961
      %v1026 = vsel %vm894, %v796, %v962
      %v1027 = vsel %vm895, %v799, %v963
      %v1028 = vsel %vm896, %v804, %v964
      %v1029 = vsel %vm897, %v807, %v965
      %v1030 = vsel %vm898, %v812, %v966
      %v1031 = vsel %vm899, %v815, %v967
      %v1032 = vsel %vm900, %v820, %v968
      %v1033 = vsel %vm901, %v823, %v969
      %v1034 = vsel %vm902, %v828, %v970
      %v1035 = vsel %vm903, %v831, %v971
      %v1036 = vsel %vm904, %v836, %v972
      %v1037 = vsel %vm905, %v839, %v973
      %1038 = vxpose.xlu0.b32.start [1/16] %v974, 128
      %1039 = vxpose.xlu0.b32.cont [2/16] %v975, 128
      %1040 = vxpose.xlu0.b32.cont [3/16] %v976, 128
      %1041 = vxpose.xlu0.b32.cont [4/16] %v977, 128
      %1042 = vxpose.xlu0.b32.cont [5/16] %v978, 128
      %1043 = vxpose.xlu0.b32.cont [6/16] %v979, 128
      %1044 = vxpose.xlu0.b32.cont [7/16] %v980, 128
      %1045 = vxpose.xlu0.b32.cont [8/16] %v981, 128
      %1046 = vxpose.xlu0.b32.cont [9/16] %v982, 128
      %1047 = vxpose.xlu0.b32.cont [10/16] %v983, 128
      %1048 = vxpose.xlu0.b32.cont [11/16] %v984, 128
      %1049 = vxpose.xlu0.b32.cont [12/16] %v985, 128
      %1050 = vxpose.xlu0.b32.cont [13/16] %v986, 128
      %1051 = vxpose.xlu0.b32.cont [14/16] %v987, 128
      %1052 = vxpose.xlu0.b32.cont [15/16] %v988, 128
      %1053 = vxpose.xlu0.b32.end [16/16] %v989, 128
      %v1054 = vpop.trf.xlu0
      %v1055 = vpop.trf.xlu0
      %v1056 = vpop.trf.xlu0
      %v1057 = vpop.trf.xlu0
      %v1058 = vpop.trf.xlu0
      %v1059 = vpop.trf.xlu0
      %v1060 = vpop.trf.xlu0
      %v1061 = vpop.trf.xlu0
      %v1062 = vpop.trf.xlu0
      %v1063 = vpop.trf.xlu0
      %v1064 = vpop.trf.xlu0
      %v1065 = vpop.trf.xlu0
      %v1066 = vpop.trf.xlu0
      %v1067 = vpop.trf.xlu0
      %v1068 = vpop.trf.xlu0
      %v1069 = vpop.trf.xlu0
      %1070 = vxpose.xlu0.b32.start [1/16] %v990, 128
      %1071 = vxpose.xlu0.b32.cont [2/16] %v991, 128
      %1072 = vxpose.xlu0.b32.cont [3/16] %v992, 128
      %1073 = vxpose.xlu0.b32.cont [4/16] %v993, 128
      %1074 = vxpose.xlu0.b32.cont [5/16] %v994, 128
      %1075 = vxpose.xlu0.b32.cont [6/16] %v995, 128
      %1076 = vxpose.xlu0.b32.cont [7/16] %v996, 128
      %1077 = vxpose.xlu0.b32.cont [8/16] %v997, 128
      %1078 = vxpose.xlu0.b32.cont [9/16] %v998, 128
      %1079 = vxpose.xlu0.b32.cont [10/16] %v999, 128
      %1080 = vxpose.xlu0.b32.cont [11/16] %v1000, 128
      %1081 = vxpose.xlu0.b32.cont [12/16] %v1001, 128
      %1082 = vxpose.xlu0.b32.cont [13/16] %v1002, 128
      %1083 = vxpose.xlu0.b32.cont [14/16] %v1003, 128
      %1084 = vxpose.xlu0.b32.cont [15/16] %v1004, 128
      %1085 = vxpose.xlu0.b32.end [16/16] %v1005, 128
      %v1086 = vpop.trf.xlu0
      %v1087 = vpop.trf.xlu0
      %v1088 = vpop.trf.xlu0
      %v1089 = vpop.trf.xlu0
      %v1090 = vpop.trf.xlu0
      %v1091 = vpop.trf.xlu0
      %v1092 = vpop.trf.xlu0
      %v1093 = vpop.trf.xlu0
      %v1094 = vpop.trf.xlu0
      %v1095 = vpop.trf.xlu0
      %v1096 = vpop.trf.xlu0
      %v1097 = vpop.trf.xlu0
      %v1098 = vpop.trf.xlu0
      %v1099 = vpop.trf.xlu0
      %v1100 = vpop.trf.xlu0
      %v1101 = vpop.trf.xlu0
      %1102 = vxpose.xlu0.b32.start [1/16] %v1006, 128
      %1103 = vxpose.xlu0.b32.cont [2/16] %v1007, 128
      %1104 = vxpose.xlu0.b32.cont [3/16] %v1008, 128
      %1105 = vxpose.xlu0.b32.cont [4/16] %v1009, 128
      %1106 = vxpose.xlu0.b32.cont [5/16] %v1010, 128
      %1107 = vxpose.xlu0.b32.cont [6/16] %v1011, 128
      %1108 = vxpose.xlu0.b32.cont [7/16] %v1012, 128
      %1109 = vxpose.xlu0.b32.cont [8/16] %v1013, 128
      %1110 = vxpose.xlu0.b32.cont [9/16] %v1014, 128
      %1111 = vxpose.xlu0.b32.cont [10/16] %v1015, 128
      %1112 = vxpose.xlu0.b32.cont [11/16] %v1016, 128
      %1113 = vxpose.xlu0.b32.cont [12/16] %v1017, 128
      %1114 = vxpose.xlu0.b32.cont [13/16] %v1018, 128
      %1115 = vxpose.xlu0.b32.cont [14/16] %v1019, 128
      %1116 = vxpose.xlu0.b32.cont [15/16] %v1020, 128
      %1117 = vxpose.xlu0.b32.end [16/16] %v1021, 128
      %v1118 = vpop.trf.xlu0
      %v1119 = vpop.trf.xlu0
      %v1120 = vpop.trf.xlu0
      %v1121 = vpop.trf.xlu0
      %v1122 = vpop.trf.xlu0
      %v1123 = vpop.trf.xlu0
      %v1124 = vpop.trf.xlu0
      %v1125 = vpop.trf.xlu0
      %v1126 = vpop.trf.xlu0
      %v1127 = vpop.trf.xlu0
      %v1128 = vpop.trf.xlu0
      %v1129 = vpop.trf.xlu0
      %v1130 = vpop.trf.xlu0
      %v1131 = vpop.trf.xlu0
      %v1132 = vpop.trf.xlu0
      %v1133 = vpop.trf.xlu0
      %1134 = vxpose.xlu0.b32.start [1/16] %v1022, 128
      %1135 = vxpose.xlu0.b32.cont [2/16] %v1023, 128
      %1136 = vxpose.xlu0.b32.cont [3/16] %v1024, 128
      %1137 = vxpose.xlu0.b32.cont [4/16] %v1025, 128
      %1138 = vxpose.xlu0.b32.cont [5/16] %v1026, 128
      %1139 = vxpose.xlu0.b32.cont [6/16] %v1027, 128
      %1140 = vxpose.xlu0.b32.cont [7/16] %v1028, 128
      %1141 = vxpose.xlu0.b32.cont [8/16] %v1029, 128
      %1142 = vxpose.xlu0.b32.cont [9/16] %v1030, 128
      %1143 = vxpose.xlu0.b32.cont [10/16] %v1031, 128
      %1144 = vxpose.xlu0.b32.cont [11/16] %v1032, 128
      %1145 = vxpose.xlu0.b32.cont [12/16] %v1033, 128
      %1146 = vxpose.xlu0.b32.cont [13/16] %v1034, 128
      %1147 = vxpose.xlu0.b32.cont [14/16] %v1035, 128
      %1148 = vxpose.xlu0.b32.cont [15/16] %v1036, 128
      %1149 = vxpose.xlu0.b32.end [16/16] %v1037, 128
      %v1150 = vpop.trf.xlu0
      %v1151 = vpop.trf.xlu0
      %v1152 = vpop.trf.xlu0
      %v1153 = vpop.trf.xlu0
      %v1154 = vpop.trf.xlu0
      %v1155 = vpop.trf.xlu0
      %v1156 = vpop.trf.xlu0
      %v1157 = vpop.trf.xlu0
      %v1158 = vpop.trf.xlu0
      %v1159 = vpop.trf.xlu0
      %v1160 = vpop.trf.xlu0
      %v1161 = vpop.trf.xlu0
      %v1162 = vpop.trf.xlu0
      %v1163 = vpop.trf.xlu0
      %v1164 = vpop.trf.xlu0
      %v1165 = vpop.trf.xlu0
      %1166 = vst [vmem:[%s208] sm:$0xff] %v1054
      %1167 = vst [vmem:[%s208 + $0x8] sm:$0xff] %v1086
      %1168 = vst [vmem:[%s208 + $0x10] sm:$0xff] %v1118
      %1169 = vst [vmem:[%s208 + $0x18] sm:$0xff] %v1150
      %s1170 = smul.u32 4, %s19
      %p1171 = scmp.lt.s32.totalorder %s18, 1
      %s1172 = scalar_select %p1171, %s18, 1
      %p1173 = scmp.lt.s32.totalorder %s1170, 3
      %s1174 = scalar_select %p1173, %s1170, 3
      %s1175 = smul.addr %s1172, 4
      %s1176 = sadd.s32 %s1174, %s1175
      %s1177 = smul.addr %s1176, 8
      %s1178 = scalar_lea.vmem %s3, %s1177
      // Predicated region
      $region33: #{downconv_pallas.1} parent=31 // pred_check
        %p1179 = pneg %p116
      $region34: #{downconv_pallas.1} parent=31 // pred_check_branch
        %1181 = sbr.rel (%p1179) target = $region36
      $region35: #{downconv_pallas.1} parent=31 // pred_region
        %s1182 = smul.u32 4, %s19
      $region36: #{downconv_pallas.1} parent=31 // pred_fallthru
        _
    $region32: #{downconv_pallas.1} parent=5 // pred_fallthru
      _
    %p1183 = scmp.le.s32.totalorder 2, %s9
    // Predicated region
    $region37: #{downconv_pallas.1} parent=5 // pred_check
      %p1184 = pneg %p1183
    $region38: #{downconv_pallas.1} parent=5 // pred_check_branch
      %1186 = sbr.rel (%p1184) target = $region40
    $region39: #{downconv_pallas.1} parent=5 // pred_region
      %s1187 = ssub.s32 %s9, 2
      // Predicated region
      $region41: #{downconv_pallas.1} parent=39 // pred_check
        %p1188 = pneg %p122
      $region42: #{downconv_pallas.1} parent=39 // pred_check_branch
        %1190 = sbr.rel (%p1188) target = $region44
      $region43: #{downconv_pallas.1} parent=39 // pred_region
        %s1191 = smul.u32 4, %s21
        %p1192 = scmp.lt.s32.totalorder %s20, 1
        %s1193 = scalar_select %p1192, %s20, 1
        %p1194 = scmp.lt.s32.totalorder %s1191, 3
        %s1195 = scalar_select %p1194, %s1191, 3
        %s1196 = smul.addr %s1193, 4
        %s1197 = sadd.s32 %s1195, %s1196
        %s1198 = smul.addr %s1197, 8
        %s1199 = scalar_lea.vmem %s3, %s1198
      $region44: #{downconv_pallas.1} parent=39 // pred_fallthru
        _
    $region40: #{downconv_pallas.1} parent=5 // pred_fallthru
      _
  $region6: #{downconv_pallas.1} parent=0 // loop_footer
    %s13 = sadd.s32 1, %s9
  $region7: #{downconv_pallas.1} parent=0 // loop_footer_branch
    %8 = sbr.rel target = $region3
  $region8: #{downconv_pallas.1} parent=0 // loop_exit
    _

</llo_original>
